<compile_context>
chip_gen: v7x
topology: tpu7x:2x2x1
jax: 0.10.0
libtpu: 0.0.40
codegen_flags: <defaults>
</compile_context>

<pallas_src>
import functools
import math

import jax
import jax.numpy as jnp
from jax import lax
from jax.experimental import pallas as pl
from jax.experimental.pallas import tpu as pltpu


# ---------------------------------------------------------------------------
# Pallas kernel: one fused conv-as-GEMM lane tile + bias + PReLU epilogue
# ---------------------------------------------------------------------------
def _conv_gemm_bias_prelu_kernel(w_ref, b_ref, alpha_ref, p_ref, o_ref):
  """w_ref     : (Co, 9C)  bf16 dense conv weights (tap index fastest)
     b_ref     : (Co, 1)   f32  conv bias
     alpha_ref : (1,)      f32  PReLU alpha (SMEM scalar)
     p_ref     : (9C, TM)  bf16 im2col patch columns for this lane tile
     o_ref     : (Co, TM)  f32  conv + bias + PReLU output, lane-dense
  """
  acc = jnp.dot(w_ref[...], p_ref[...],
                preferred_element_type=jnp.float32) + b_ref[...]
  alpha = alpha_ref[0]
  o_ref[...] = jnp.where(acc > 0.0, acc, alpha * acc)


# ---------------------------------------------------------------------------
# Wrapper: im2col -> pallas_call -> pixel shuffle (layout glue)
# ---------------------------------------------------------------------------
def upsample_block(x, w, b, alpha, *, up_scale, lane_tile=256):
  """UpsampleBLock forward.  x: (N, C, H, W) f32, w: (Co=C*r^2, C, 3, 3)."""
  r = up_scale
  N, C, H, W = x.shape
  Co = C * r * r
  assert w.shape == (Co, C, 3, 3)
  K9 = 9 * C

  # im2col: columns are output pixels (n, h, w); rows are (c, di, dj) so they
  # line up with the row-major flatten of the (Co, C, 3, 3) weights.
  xpad = jnp.pad(x, ((0, 0), (0, 0), (1, 1), (1, 1)))
  patches = jnp.stack(
      [xpad[:, :, di:di + H, dj:dj + W] for di in range(3) for dj in range(3)],
      axis=2)                                            # (N, C, 9, H, W)
  p = patches.transpose(1, 2, 0, 3, 4).reshape(K9, N * H * W)

  M = N * H * W
  Mp = pl.cdiv(M, lane_tile) * lane_tile                 # 128/256-aligned lanes
  if Mp != M:
    p = jnp.pad(p, ((0, 0), (0, Mp - M)))
  p = p.astype(jnp.bfloat16)

  w2 = w.reshape(Co, K9).astype(jnp.bfloat16)            # (Co, 9C)
  b2 = b.reshape(Co, 1).astype(jnp.float32)

  # Right-sized scoped VMEM: double-buffered blocks + generous headroom.
  tile_bytes = Co * K9 * 2 + Co * 4 + K9 * lane_tile * 2 + Co * lane_tile * 4
  vmem_limit = int(max(2 * 1024 * 1024, 16 * tile_bytes))

  out = pl.pallas_call(
      _conv_gemm_bias_prelu_kernel,
      out_shape=jax.ShapeDtypeStruct((Co, Mp), jnp.float32),
      grid=(Mp // lane_tile,),
      in_specs=[
          pl.BlockSpec((Co, K9), lambda m: (0, 0)),       # weights (fetched once)
          pl.BlockSpec((Co, 1), lambda m: (0, 0)),        # bias (fetched once)
          pl.BlockSpec(memory_space=pltpu.MemorySpace.SMEM),  # PReLU alpha
          pl.BlockSpec((K9, lane_tile), lambda m: (0, m)),    # patch lane tile
      ],
      out_specs=pl.BlockSpec((Co, lane_tile), lambda m: (0, m)),
      compiler_params=pltpu.CompilerParams(
          dimension_semantics=("parallel",),
          vmem_limit_bytes=vmem_limit),
  )(w2, b2, alpha, p)

  # Pixel shuffle + batch un-fold (pure permutation; single XLA transpose).
  # PReLU already applied in-kernel (single shared alpha commutes with the
  # shuffle).
  y = out[:, :M].reshape(C, r, r, N, H, W)
  y = y.transpose(3, 0, 4, 1, 5, 2)                       # (N, C, H, r, W, r)
  return y.reshape(N, C, H * r, W * r)


# ---------------------------------------------------------------------------
# Pure-JAX reference (for correctness check only)
# ---------------------------------------------------------------------------
def _reference(x, w, b, alpha, r):
  y = lax.conv_general_dilated(
      x, w, window_strides=(1, 1), padding=((1, 1), (1, 1)),
      dimension_numbers=("NCHW", "OIHW", "NCHW"),
      precision=lax.Precision.HIGHEST)
  y = y + b[None, :, None, None]
  N, Co, H, W = y.shape
  C = Co // (r * r)
  y = y.reshape(N, C, r, r, H, W).transpose(0, 1, 4, 2, 5, 3)
  y = y.reshape(N, C, H * r, W * r)
  return jnp.where(y > 0.0, y, alpha[0] * y)


# ---------------------------------------------------------------------------
if __name__ == "__main__":
  key = jax.random.PRNGKey(0)
  kx, kw, kb = jax.random.split(key, 3)

  N, C, H, W = 2, 4, 16, 16
  r = 2
  Co = C * r * r

  x = jax.random.uniform(kx, (N, C, H, W), jnp.float32)
  fan_in = C * 3 * 3
  w = jax.random.normal(kw, (Co, C, 3, 3), jnp.float32) / math.sqrt(fan_in)
  b = (jax.random.uniform(kb, (Co,), jnp.float32) - 0.5) / math.sqrt(fan_in)
  alpha = jnp.full((1,), 0.25, jnp.float32)      # nn.PReLU() default init

  fwd = jax.jit(functools.partial(upsample_block, up_scale=r))
  out = jax.block_until_ready(fwd(x, w, b, alpha))

  assert out.shape == (N, C, H * r, W * r) and out.dtype == jnp.float32
  assert bool(jnp.all(jnp.isfinite(out)))

  ref = _reference(x, w, b, alpha, r)
  assert bool(jnp.allclose(out, ref, rtol=5e-2, atol=5e-2)), (
      float(jnp.max(jnp.abs(out - ref))))

  print("KERNEL_OK")
</pallas_src>

<mosaic_0001>
module attributes {stable_mosaic.version = 11 : i64} {
  func.func @_conv_gemm_bias_prelu_kernel(%arg0: i32, %arg1: memref<16x36xbf16, #tpu.memory_space<vmem>>, %arg2: memref<16x1xf32, #tpu.memory_space<vmem>>, %arg3: memref<1xf32, #tpu.memory_space<smem>>, %arg4: memref<36x256xbf16, #tpu.memory_space<vmem>>, %arg5: memref<16x256xf32, #tpu.memory_space<vmem>>) attributes {dimension_semantics = [#tpu.dimension_semantics<parallel>], iteration_bounds = array<i64: 2>, scalar_prefetch = 0 : i64, scratch_operands = 0 : i64, tpu.core_type = #tpu.core_type<tc>, window_params = [{pipeline_mode = #tpu.pipeline_mode<synchronous>, transform_indices = @transform_0, window_bounds = array<i64: 16, 36>}, {pipeline_mode = #tpu.pipeline_mode<synchronous>, transform_indices = @transform_1, window_bounds = array<i64: 16, 1>}, {transform_indices = @transform_2, window_bounds = array<i64: 1>}, {transform_indices = @transform_3, window_bounds = array<i64: 36, 256>}, {transform_indices = @transform_4, window_bounds = array<i64: 16, 256>}]} {
    %c0 = arith.constant 0 : index
    %c0_0 = arith.constant 0 : index
    %0 = vector.load %arg1[%c0, %c0_0] : memref<16x36xbf16, #tpu.memory_space<vmem>>, vector<16x36xbf16>
    %c0_1 = arith.constant 0 : index
    %c0_2 = arith.constant 0 : index
    %1 = vector.load %arg4[%c0_1, %c0_2] : memref<36x256xbf16, #tpu.memory_space<vmem>>, vector<36x256xbf16>
    %cst = arith.constant dense<0.000000e+00> : vector<16x256xf32>
    %2 = tpu.matmul %0, %1, %cst {dimension_numbers = #tpu.dot_dimension_numbers<[1], [0], [0], [1], [0, 0, 1, 1], [], []>} : vector<16x36xbf16>, vector<36x256xbf16>, vector<16x256xf32> -> vector<16x256xf32>
    %c0_3 = arith.constant 0 : index
    %c0_4 = arith.constant 0 : index
    %3 = vector.load %arg2[%c0_3, %c0_4] : memref<16x1xf32, #tpu.memory_space<vmem>>, vector<16x1xf32>
    %4 = vector.broadcast %3 : vector<16x1xf32> to vector<16x256xf32>
    %5 = arith.addf %2, %4 : vector<16x256xf32>
    %c0_5 = arith.constant 0 : index
    %6 = memref.load %arg3[%c0_5] : memref<1xf32, #tpu.memory_space<smem>>
    %cst_6 = arith.constant 0.000000e+00 : f32
    %7 = vector.broadcast %cst_6 : f32 to vector<16x256xf32>
    %8 = arith.cmpf ogt, %5, %7 : vector<16x256xf32>
    %9 = vector.broadcast %6 : f32 to vector<16x256xf32>
    %10 = arith.mulf %9, %5 : vector<16x256xf32>
    %11 = arith.select %8, %5, %10 : vector<16x256xi1>, vector<16x256xf32>
    %c0_7 = arith.constant 0 : index
    %c0_8 = arith.constant 0 : index
    %12 = vector.load %arg5[%c0_7, %c0_8] : memref<16x256xf32, #tpu.memory_space<vmem>>, vector<16x256xf32>
    tpu.vector_store %arg5[%c0_7, %c0_8], %11 {strides = array<i32>} : memref<16x256xf32, #tpu.memory_space<vmem>>, vector<16x256xf32>,
    return
  }
  func.func @transform_0(%arg0: i32) -> (i32, i32) {
    %c0_i32 = arith.constant 0 : i32
    %c0_i32_0 = arith.constant 0 : i32
    %c0_i32_1 = arith.constant 0 : i32
    return %c0_i32, %c0_i32_0 : i32, i32
  }
  func.func @transform_1(%arg0: i32) -> (i32, i32) {
    %c0_i32 = arith.constant 0 : i32
    %c0_i32_0 = arith.constant 0 : i32
    %c0_i32_1 = arith.constant 0 : i32
    return %c0_i32, %c0_i32_0 : i32, i32
  }
  func.func @transform_2(%arg0: i32) -> i32 {
    %c0_i32 = arith.constant 0 : i32
    %c0_i32_0 = arith.constant 0 : i32
    return %c0_i32 : i32
  }
  func.func @transform_3(%arg0: i32) -> (i32, i32) {
    %c0_i32 = arith.constant 0 : i32
    %c0_i32_0 = arith.constant 0 : i32
    return %c0_i32, %arg0 : i32, i32
  }
  func.func @transform_4(%arg0: i32) -> (i32, i32) {
    %c0_i32 = arith.constant 0 : i32
    %c0_i32_0 = arith.constant 0 : i32
    return %c0_i32, %arg0 : i32, i32
  }
}

</mosaic_0001>

<llo_original>
// kernel: upsample_block.1
$region0: #{upsample_block.1}
  #allocation0 [shape = 'u32[]', space=smem, size = 0x4, offset = 0x4, fixed_abs, tag = 'smem constant byte address 0x4 - core index']
  #allocation1 [shape = 'u32[144,128]{1,0:T(1,128)}', space=vmem, size = 0x12000, scoped, tag = 'internal scratch']
  #allocation2 [shape = 'f32[1]{0:T(128)S(6)}', space=smem, size = 0x200, scoped, tag = 'scoped memory for upsample_block.1']
  %s0 = inlined_call_operand.vmem [shape: bf16[16,36], index: 0, kind: input, shape index: {}]
  %s1 = inlined_call_operand.vmem [shape: f32[16,1], index: 1, kind: input, shape index: {}]
  %s2 = inlined_call_operand.<no memory space> [shape: f32[1], index: 2, kind: input, shape index: {}]
  %s3 = inlined_call_operand.vmem [shape: bf16[36,512], index: 3, kind: input, shape index: {}]
  %s4 = inlined_call_operand.vmem [shape: f32[16,512], index: 4, kind: output, shape index: {}]
  %s5 = sld [smem:[#allocation0]]
  $region106: #{upsample_block.1} parent=0
    _
  %s7 = ssub.s32 1, %s5
  %s8 = scalar_select 0, %s7, %s5
  %9 = sst [smem:[#allocation2]] %s2
  $region1: #{upsample_block.1} parent=0
    #allocation3 [shape = 'u8[40960]{0}', space=vmem, size = 0xa000, scoped, tag = 'input window, operand 3']
    #allocation4 [shape = 'u8[32768]{0}', space=vmem, size = 0x8000, scoped, tag = 'output window, operand 0']
    loop: start=0, step=1, limit=4
    $region2: #{upsample_block.1} parent=1 // loop_pre_header
      _
    $region3: #{upsample_block.1} parent=1 // loop_header
      %s11 = sphi 0, %s15
      %p12 = scmp.ge.s32.totalorder %s11, 4
      %s19 = sphi 0, %s19
      %s21 = sphi 0, %s19
      %s22 = sphi 0, %s21
      %s36 = sphi 0, %s22
      %s40 = sphi 0, %s40
      %s42 = sphi 0, %s40
      %s43 = sphi 0, %s42
      %s57 = sphi 0, %s43
      %s61 = sphi 0, %s61
      %s63 = sphi 0, %s61
      %s64 = sphi 0, %s63
      %s78 = sphi 0, %s64
      %s84 = sphi 0, %s86
      %s87 = sphi 0, %s84
      %s88 = sphi 0, %s87
      %s104 = sphi 0, %s88
      %s110 = sphi 0, %s112
      %s113 = sphi 0, %s110
      %s114 = sphi 0, %s113
      %s130 = sphi 0, %s114
    $region4: #{upsample_block.1} parent=1 // loop_header_branch
      %14 = sbr.rel (%p12) target = $region8
    $region5: #{upsample_block.1} parent=1 // loop_body
      %s16 = ssub.s32 %s11, 1
      %s17 = ssub.s32 %s11, 2
      %s18 = sadd.s32 %s11, 1
      %s20 = sadd.s32 %s19, 1
      %p23 = scmp.eq.s32.totalorder %s11, 1
      %p24 = scmp.ne.s32.totalorder %s19, %s21
      %p25 = scmp.eq.s32.totalorder %s11, 0
      %p26 = por %p24, %p25
      %p27 = scmp.ne.s32.totalorder %s19, %s21
      %p28 = scmp.eq.s32.totalorder %s16, 1
      %p29 = por %p27, %p28
      %p30 = scmp.ne.s32.totalorder %s21, %s22
      %p31 = scmp.eq.s32.totalorder %s16, 0
      %p32 = por %p30, %p31
      %p33 = scmp.ne.s32.totalorder %s21, %s22
      %p34 = scmp.eq.s32.totalorder %s17, 1
      %p35 = por %p33, %p34
      %p37 = scmp.ne.s32.totalorder %s22, %s36
      %p38 = scmp.eq.s32.totalorder %s17, 0
      %p39 = por %p37, %p38
      %s41 = sadd.s32 %s40, 1
      %p44 = scmp.eq.s32.totalorder %s11, 1
      %p45 = scmp.ne.s32.totalorder %s40, %s42
      %p46 = scmp.eq.s32.totalorder %s11, 0
      %p47 = por %p45, %p46
      %p48 = scmp.ne.s32.totalorder %s40, %s42
      %p49 = scmp.eq.s32.totalorder %s16, 1
      %p50 = por %p48, %p49
      %p51 = scmp.ne.s32.totalorder %s42, %s43
      %p52 = scmp.eq.s32.totalorder %s16, 0
      %p53 = por %p51, %p52
      %p54 = scmp.ne.s32.totalorder %s42, %s43
      %p55 = scmp.eq.s32.totalorder %s17, 1
      %p56 = por %p54, %p55
      %p58 = scmp.ne.s32.totalorder %s43, %s57
      %p59 = scmp.eq.s32.totalorder %s17, 0
      %p60 = por %p58, %p59
      %s62 = sadd.s32 %s61, 1
      %p65 = scmp.eq.s32.totalorder %s11, 1
      %p66 = scmp.ne.s32.totalorder %s61, %s63
      %p67 = scmp.eq.s32.totalorder %s11, 0
      %p68 = por %p66, %p67
      %p69 = scmp.ne.s32.totalorder %s61, %s63
      %p70 = scmp.eq.s32.totalorder %s16, 1
      %p71 = por %p69, %p70
      %p72 = scmp.ne.s32.totalorder %s63, %s64
      %p73 = scmp.eq.s32.totalorder %s16, 0
      %p74 = por %p72, %p73
      %p75 = scmp.ne.s32.totalorder %s63, %s64
      %p76 = scmp.eq.s32.totalorder %s17, 1
      %p77 = por %p75, %p76
      %p79 = scmp.ne.s32.totalorder %s64, %s78
      %p80 = scmp.eq.s32.totalorder %s17, 0
      %p81 = por %p79, %p80
      %s82 = ssub.s32 %s11, %s18
      %p83 = scmp.eq.s32.totalorder %s82, 0
      %s85 = sadd.s32 %s84, 1
      %s86 = scalar_select %p83, %s84, %s85
      %p89 = pneg %p83
      %p90 = scmp.eq.s32.totalorder %s11, 1
      %p91 = por %p89, %p90
      %p92 = scmp.ne.s32.totalorder %s84, %s87
      %p93 = scmp.eq.s32.totalorder %s11, 0
      %p94 = por %p92, %p93
      %p95 = scmp.ne.s32.totalorder %s84, %s87
      %p96 = scmp.eq.s32.totalorder %s16, 1
      %p97 = por %p95, %p96
      %p98 = scmp.ne.s32.totalorder %s87, %s88
      %p99 = scmp.eq.s32.totalorder %s16, 0
      %p100 = por %p98, %p99
      %p101 = scmp.ne.s32.totalorder %s87, %s88
      %p102 = scmp.eq.s32.totalorder %s17, 1
      %p103 = por %p101, %p102
      %p105 = scmp.ne.s32.totalorder %s88, %s104
      %p106 = scmp.eq.s32.totalorder %s17, 0
      %p107 = por %p105, %p106
      %s108 = ssub.s32 %s11, %s18
      %p109 = scmp.eq.s32.totalorder %s108, 0
      %s111 = sadd.s32 %s110, 1
      %s112 = scalar_select %p109, %s110, %s111
      %p115 = pneg %p109
      %p116 = scmp.eq.s32.totalorder %s11, 1
      %p117 = por %p115, %p116
      %p118 = scmp.ne.s32.totalorder %s110, %s113
      %p119 = scmp.eq.s32.totalorder %s11, 0
      %p120 = por %p118, %p119
      %p121 = scmp.ne.s32.totalorder %s110, %s113
      %p122 = scmp.eq.s32.totalorder %s16, 1
      %p123 = por %p121, %p122
      %p124 = scmp.ne.s32.totalorder %s113, %s114
      %p125 = scmp.eq.s32.totalorder %s16, 0
      %p126 = por %p124, %p125
      %p127 = scmp.ne.s32.totalorder %s113, %s114
      %p128 = scmp.eq.s32.totalorder %s17, 1
      %p129 = por %p127, %p128
      %p131 = scmp.ne.s32.totalorder %s114, %s130
      %p132 = scmp.eq.s32.totalorder %s17, 0
      %p133 = por %p131, %p132
      %p134 = scmp.le.s32.totalorder 1, %s11
      %p135 = scmp.lt.s32.totalorder %s11, 3
      %p136 = pnand %p134, %p135
      %p137 = pneg %p136
      // Predicated region
      $region9: #{upsample_block.1} parent=5 // pred_check
        _
      $region10: #{upsample_block.1} parent=5 // pred_check_branch
        %139 = sbr.rel (%p136) target = $region12
      $region11: #{upsample_block.1} parent=5 // pred_region
        %s140 = ssub.s32 %s11, 1
        // Predicated region
        $region13: #{upsample_block.1} parent=11 // pred_check
          %p141 = pneg %p32
        $region14: #{upsample_block.1} parent=11 // pred_check_branch
          %143 = sbr.rel (%p141) target = $region16
        $region15: #{upsample_block.1} parent=11 // pred_region
          _
        $region16: #{upsample_block.1} parent=11 // pred_fallthru
          _
        // Predicated region
        $region17: #{upsample_block.1} parent=11 // pred_check
          %p144 = pneg %p53
        $region18: #{upsample_block.1} parent=11 // pred_check_branch
          %146 = sbr.rel (%p144) target = $region20
        $region19: #{upsample_block.1} parent=11 // pred_region
          _
        $region20: #{upsample_block.1} parent=11 // pred_fallthru
          _
        // Predicated region
        $region21: #{upsample_block.1} parent=11 // pred_check
          %p147 = pneg %p74
        $region22: #{upsample_block.1} parent=11 // pred_check_branch
          %149 = sbr.rel (%p147) target = $region24
        $region23: #{upsample_block.1} parent=11 // pred_region
          _
        $region24: #{upsample_block.1} parent=11 // pred_fallthru
          _
      $region12: #{upsample_block.1} parent=5 // pred_fallthru
        _
      %p150 = scmp.lt.s32.totalorder %s11, 2
      // Predicated region
      $region25: #{upsample_block.1} parent=5 // pred_check
        %p151 = pneg %p150
      $region26: #{upsample_block.1} parent=5 // pred_check_branch
        %153 = sbr.rel (%p151) target = $region28
      $region27: #{upsample_block.1} parent=5 // pred_region
        // Predicated region
        $region29: #{upsample_block.1} parent=27 // pred_check
          %p154 = pneg %p94
        $region30: #{upsample_block.1} parent=27 // pred_check_branch
          %156 = sbr.rel (%p154) target = $region32
        $region31: #{upsample_block.1} parent=27 // pred_region
          %s157 = sand.u32 %s84, 1
          %s158 = sand.u32 %s84, 1
          %s159 = smul.addr %s158, 40
          %s160 = scalar_lea.vmem [#allocation3], %s159
          %s161 = smul.u32 2, %s11
          %s162 = smul.addr %s161, 4
          %s163 = scalar_lea.vmem %s3, %s162
          // Predicated region
          $region33: #{upsample_block.1} parent=31 // pred_check
            _
          $region34: #{upsample_block.1} parent=31 // pred_check_branch
            %165 = sbr.rel (0) target = $region36
          $region35: #{upsample_block.1} parent=31 // pred_region
            // Predicated region
            $region37: #{upsample_block.1} parent=35 // pred_check
              _
            $region38: #{upsample_block.1} parent=35 // pred_check_branch
              %167 = sbr.rel (0) target = $region40
            $region39: #{upsample_block.1} parent=35 // pred_region
              // Predicated region
              $region52: #{upsample_block.1} parent=39 // pred_check
                _
              $region53: #{upsample_block.1} parent=39 // pred_check_branch
                %190 = sbr.rel (0) target = $region55
              $region54: #{upsample_block.1} parent=39 // pred_region
                loop: start=0, step=1, limit=1
                $region56: #{upsample_block.1} parent=54 // loop_pre_header
                  _
                $region57: #{upsample_block.1} parent=54 // loop_header
                  %s192 = sphi 0, %s196
                  %p193 = scmp.ge.s32.totalorder %s192, 1
                  %s197 = sphi %s163, %s163
                  %s198 = sphi %s160, %s160
                $region58: #{upsample_block.1} parent=54 // loop_header_branch
                  %195 = sbr.rel (%p193) target = $region62
                $region59: #{upsample_block.1} parent=54 // loop_body
                  %v199 = vld [vmem:[%s197] sm:$0xff]
                  %200 = vst [vmem:[%s198] sm:$0xff] %v199
                  %v201 = vld [vmem:[%s197 + $0x10] sm:$0xff]
                  %202 = vst [vmem:[%s198 + $0x8] sm:$0xff] %v201
                  %v203 = vld [vmem:[%s197 + $0x20] sm:$0xff]
                  %204 = vst [vmem:[%s198 + $0x10] sm:$0xff] %v203
                  %v205 = vld [vmem:[%s197 + $0x30] sm:$0xff]
                  %206 = vst [vmem:[%s198 + $0x18] sm:$0xff] %v205
                  %v207 = vld [vmem:[%s197 + $0x40] sm:$0xff]
                  %208 = vst [vmem:[%s198 + $0x20] sm:$0xff] %v207
                $region60: #{upsample_block.1} parent=54 // loop_footer
                  %s196 = sadd.s32 1, %s192
                $region61: #{upsample_block.1} parent=54 // loop_footer_branch
                  %191 = sbr.rel target = $region57
                $region62: #{upsample_block.1} parent=54 // loop_exit
                  _
              $region55: #{upsample_block.1} parent=39 // pred_fallthru
                _
              // Predicated region
              $region63: #{upsample_block.1} parent=39 // pred_check
                _
              $region64: #{upsample_block.1} parent=39 // pred_check_branch
                %210 = sbr.rel target = $region66
              $region65: #{upsample_block.1} parent=39 // pred_region
                _
              $region66: #{upsample_block.1} parent=39 // pred_fallthru
                _
            $region40: #{upsample_block.1} parent=35 // pred_fallthru
              _
            // Predicated region
            $region41: #{upsample_block.1} parent=35 // pred_check
              _
            $region42: #{upsample_block.1} parent=35 // pred_check_branch
              %169 = sbr.rel target = $region44
            $region43: #{upsample_block.1} parent=35 // pred_region
              loop: start=0, step=1, limit=1
              $region45: #{upsample_block.1} parent=43 // loop_pre_header
                _
              $region46: #{upsample_block.1} parent=43 // loop_header
                %s172 = sphi 0, %s176
                %p173 = scmp.ge.s32.totalorder %s172, 1
                %s177 = sphi %s163, %s163
                %s178 = sphi %s160, %s160
              $region47: #{upsample_block.1} parent=43 // loop_header_branch
                %175 = sbr.rel (%p173) target = $region51
              $region48: #{upsample_block.1} parent=43 // loop_body
                %v179 = vld [vmem:[%s177] sm:$0xff]
                %180 = vst [vmem:[%s178] sm:$0xff] %v179
                %v181 = vld [vmem:[%s177 + $0x10] sm:$0xff]
                %182 = vst [vmem:[%s178 + $0x8] sm:$0xff] %v181
                %v183 = vld [vmem:[%s177 + $0x20] sm:$0xff]
                %184 = vst [vmem:[%s178 + $0x10] sm:$0xff] %v183
                %v185 = vld [vmem:[%s177 + $0x30] sm:$0xff]
                %186 = vst [vmem:[%s178 + $0x18] sm:$0xff] %v185
                %v187 = vld [vmem:[%s177 + $0x40] sm:$0xff]
                %188 = vst [vmem:[%s178 + $0x20] sm:$0xff] %v187
              $region49: #{upsample_block.1} parent=43 // loop_footer
                %s176 = sadd.s32 1, %s172
              $region50: #{upsample_block.1} parent=43 // loop_footer_branch
                %171 = sbr.rel target = $region46
              $region51: #{upsample_block.1} parent=43 // loop_exit
                _
            $region44: #{upsample_block.1} parent=35 // pred_fallthru
              _
          $region36: #{upsample_block.1} parent=31 // pred_fallthru
            _
          %211 = vnop
        $region32: #{upsample_block.1} parent=27 // pred_fallthru
          _
      $region28: #{upsample_block.1} parent=5 // pred_fallthru
        _
      %p212 = scmp.le.s32.totalorder 1, %s11
      %p213 = scmp.lt.s32.totalorder %s11, 3
      %p214 = pnand %p212, %p213
      %p215 = pneg %p214
      // Predicated region
      $region67: #{upsample_block.1} parent=5 // pred_check
        _
      $region68: #{upsample_block.1} parent=5 // pred_check_branch
        %217 = sbr.rel (%p214) target = $region70
      $region69: #{upsample_block.1} parent=5 // pred_region
        %s218 = ssub.s32 %s11, 1
        %s219 = sand.u32 %s87, 1
        %s220 = sand.u32 %s87, 1
        %s221 = smul.addr %s220, 40
        %s222 = scalar_lea.vmem [#allocation3], %s221
        // Predicated region
        $region71: #{upsample_block.1} parent=69 // pred_check
          %p223 = pneg %p100
        $region72: #{upsample_block.1} parent=69 // pred_check_branch
          %225 = sbr.rel (%p223) target = $region74
        $region73: #{upsample_block.1} parent=69 // pred_region
          _
        $region74: #{upsample_block.1} parent=69 // pred_fallthru
          _
        %p226 = pneg %p32
        %p227 = pneg %p29
        %p228 = pneg %p53
        %p229 = pneg %p50
        %p230 = pneg %p74
        %p231 = pneg %p71
        %s232 = sand.u32 %s87, 1
        %s233 = sand.u32 %s87, 1
        %s234 = smul.addr %s233, 40
        %s235 = scalar_lea.vmem [#allocation3], %s234
        %p236 = pneg %p100
        %p237 = pneg %p97
        %p238 = pneg %p126
        %p239 = pneg %p123
        %s240 = sand.u32 %s113, 1
        %s241 = sand.u32 %s113, 1
        %s242 = smul.addr %s241, 32
        %s243 = scalar_lea.vmem [#allocation4], %s242
        %s244 = smul.u32 2, %s16
        %s245 = smul.u32 2, %s16
        %v247 = vld [vmem:[%s0] sm:$0xf]
        %v248 = vld [vmem:[%s0 + $0x4] sm:$0xf]
        %v249 = vld [vmem:[%s222] sm:$0xff]
        %v250 = vld [vmem:[%s222 + $0x8] sm:$0xff]
        %v251 = vld [vmem:[%s222 + $0x10] sm:$0xff]
        %v252 = vld [vmem:[%s222 + $0x18] sm:$0xff]
        %v253 = vld [vmem:[%s222 + $0x20] sm:$0x33]
        %v254 = vld [vmem:[%s1] sm:$0xff]
        %v255 = vld [vmem:[%s1 + $0x8] sm:$0xff]
        %257 = vset.pattern.permute.xlu0 0
        %258 = vperm.xlu0 %257, %v254
        %v259 = vpop.permute.xlu0 %258
        %262 = vset.pattern.permute.xlu0 0
        %263 = vperm.xlu0 %262, %v255
        %v264 = vpop.permute.xlu0 %263
        %v268 = vunpack.c.l.b16 %v247
        %v269 = vunpack.c.l.b16 %v248
        %v270 = vpack.c.b16 %v269, %v268
        %v276 = vunpack.c.l.b16 %v249
        %v277 = vunpack.c.h.b16 %v249
        %v278 = vunpack.c.l.b16 %v250
        %v279 = vunpack.c.h.b16 %v250
        %v280 = vunpack.c.l.b16 %v251
        %v281 = vunpack.c.h.b16 %v251
        %v282 = vunpack.c.l.b16 %v252
        %v283 = vunpack.c.h.b16 %v252
        %v284 = vunpack.c.l.b16 %v253
        %v285 = vunpack.c.h.b16 %v253
        %v286 = vpack.c.b16 %v278, %v276
        %v287 = vpack.c.b16 %v279, %v277
        %v288 = vpack.c.b16 %v282, %v280
        %v289 = vpack.c.b16 %v283, %v281
        %v290 = vpack.c.b16 %v284, %v284
        %v291 = vpack.c.b16 %v285, %v285
        %vm296 = vcmask 293888
        %v298 = vsel %vm296, %v270, 0
        %vm300 = vcmask 1041408
        %v302 = vsel %vm300, %v290, 0
        %v305 = vsel %vm300, %v291, 0
        %307 = vmatprep.subr.bf16.mxu0 %v287
        %308 = vmatpush1.bf16.msra.mxu0 %v286
        %309 = vmatprep.subr.bf16.mxu0 %v289
        %310 = vmatpush1.bf16.msra.mxu0 %v288
        %311 = vmatprep.subr.bf16.mxu0 %v305
        %312 = vmatpush1.bf16.msra.mxu0 %v302
        %313 = vmatprep.subr.bf16.mxu0 0
        %314 = vmatpush1.bf16.msra.mxu0 0
        %315 = vmatprep.subr.bf16.mxu0 0
        %316 = vmatpush1.bf16.msra.mxu0 0
        %317 = vmatprep.subr.bf16.mxu0 0
        %318 = vmatpush1.bf16.msra.mxu0 0
        %319 = vmatprep.subr.bf16.mxu0 0
        %320 = vmatpush1.bf16.msra.mxu0 0
        %321 = vmatprep.subr.bf16.mxu0 0
        %322 = vmatpush1.bf16.msra.mxu0 0
        %323 = vmatprep.subr.bf16.mxu0 0
        %324 = vmatpush1.bf16.msra.mxu0 0
        %325 = vmatprep.subr.bf16.mxu0 0
        %326 = vmatpush1.bf16.msra.mxu0 0
        %327 = vmatprep.subr.bf16.mxu0 0
        %328 = vmatpush1.bf16.msra.mxu0 0
        %329 = vmatprep.subr.bf16.mxu0 0
        %330 = vmatpush1.bf16.msra.mxu0 0
        %331 = vmatprep.subr.bf16.mxu0 0
        %332 = vmatpush1.bf16.msra.mxu0 0
        %333 = vmatprep.subr.bf16.mxu0 0
        %334 = vmatpush1.bf16.msra.mxu0 0
        %335 = vmatprep.subr.bf16.mxu0 0
        %336 = vmatpush1.bf16.msra.mxu0 0
        %337 = vmatprep.subr.bf16.mxu0 0
        %338 = vmatpush1.bf16.msra.mxu0 0
        %339 = vmatprep.mubr.bf16.mxu0 0
        %340 = vmatmul.mubr.bf16.gmra.mrb[0].mxu0 %v298
        %v341 = vpop.f32.mrb[0].mxu0
        %v342 = vadd.f32 %v259, %v341
        %v343 = vpop.f32.mrb[0].mxu0
        %v344 = vadd.f32 %v259, %v343
        %v345 = vpop.f32.mrb[0].mxu0
        %v346 = vadd.f32 %v264, %v345
        %v347 = vpop.f32.mrb[0].mxu0
        %v348 = vadd.f32 %v264, %v347
        %349 = vdwg.mxu0
        %s350 = sld [smem:[#allocation2]]
        %vm351 = vcmp.gt.f32.partialorder %v342, 0.0
        %vm352 = vcmp.gt.f32.partialorder %v344, 0.0
        %vm353 = vcmp.gt.f32.partialorder %v346, 0.0
        %vm354 = vcmp.gt.f32.partialorder %v348, 0.0
        %v355 = vstv %s350
        %v356 = vmul.f32 %v355, %v342
        %v357 = vmul.f32 %v355, %v344
        %v358 = vmul.f32 %v355, %v346
        %v359 = vmul.f32 %v355, %v348
        %v360 = vsel %vm351, %v342, %v356
        %v361 = vsel %vm352, %v344, %v357
        %v362 = vsel %vm353, %v346, %v358
        %v363 = vsel %vm354, %v348, %v359
        %364 = vst [vmem:[%s243] sm:$0xff] %v360
        %365 = vst [vmem:[%s243 + $0x8] sm:$0xff] %v361
        %366 = vst [vmem:[%s243 + $0x10] sm:$0xff] %v362
        %367 = vst [vmem:[%s243 + $0x18] sm:$0xff] %v363
        %s368 = sand.u32 %s113, 1
        %s369 = sand.u32 %s113, 1
        %s370 = smul.addr %s369, 32
        %s371 = scalar_lea.vmem [#allocation4], %s370
        // Predicated region
        $region75: #{upsample_block.1} parent=69 // pred_check
          %p372 = pneg %p123
        $region76: #{upsample_block.1} parent=69 // pred_check_branch
          %374 = sbr.rel (%p372) target = $region78
        $region77: #{upsample_block.1} parent=69 // pred_region
          %s375 = smul.u32 2, %s16
          %s376 = smul.addr %s375, 8
          %s377 = scalar_lea.vmem %s4, %s376
          // Predicated region
          $region79: #{upsample_block.1} parent=77 // pred_check
            _
          $region80: #{upsample_block.1} parent=77 // pred_check_branch
            %379 = sbr.rel (0) target = $region82
          $region81: #{upsample_block.1} parent=77 // pred_region
            // Predicated region
            $region83: #{upsample_block.1} parent=81 // pred_check
              _
            $region84: #{upsample_block.1} parent=81 // pred_check_branch
              %381 = sbr.rel (0) target = $region86
            $region85: #{upsample_block.1} parent=81 // pred_region
              loop: start=0, step=1, limit=1
              $region87: #{upsample_block.1} parent=85 // loop_pre_header
                _
              $region88: #{upsample_block.1} parent=85 // loop_header
                %s383 = sphi 0, %s387
                %p384 = scmp.ge.s32.totalorder %s383, 1
                %s388 = sphi %s371, %s371
                %s389 = sphi %s377, %s377
              $region89: #{upsample_block.1} parent=85 // loop_header_branch
                %386 = sbr.rel (%p384) target = $region93
              $region90: #{upsample_block.1} parent=85 // loop_body
                %v390 = vld [vmem:[%s388] sm:$0xff]
                %391 = vst [vmem:[%s389] sm:$0xff] %v390
                %v392 = vld [vmem:[%s388 + $0x8] sm:$0xff]
                %393 = vst [vmem:[%s389 + $0x8] sm:$0xff] %v392
                %v394 = vld [vmem:[%s388 + $0x10] sm:$0xff]
                %395 = vst [vmem:[%s389 + $0x20] sm:$0xff] %v394
                %v396 = vld [vmem:[%s388 + $0x18] sm:$0xff]
                %397 = vst [vmem:[%s389 + $0x28] sm:$0xff] %v396
              $region91: #{upsample_block.1} parent=85 // loop_footer
                %s387 = sadd.s32 1, %s383
              $region92: #{upsample_block.1} parent=85 // loop_footer_branch
                %382 = sbr.rel target = $region88
              $region93: #{upsample_block.1} parent=85 // loop_exit
                _
            $region86: #{upsample_block.1} parent=81 // pred_fallthru
              _
            // Predicated region
            $region94: #{upsample_block.1} parent=81 // pred_check
              _
            $region95: #{upsample_block.1} parent=81 // pred_check_branch
              %399 = sbr.rel target = $region97
            $region96: #{upsample_block.1} parent=81 // pred_region
              _
            $region97: #{upsample_block.1} parent=81 // pred_fallthru
              _
          $region82: #{upsample_block.1} parent=77 // pred_fallthru
            _
          %400 = vnop
        $region78: #{upsample_block.1} parent=69 // pred_fallthru
          _
      $region70: #{upsample_block.1} parent=5 // pred_fallthru
        _
      %p401 = scmp.le.s32.totalorder 2, %s11
      // Predicated region
      $region98: #{upsample_block.1} parent=5 // pred_check
        %p402 = pneg %p401
      $region99: #{upsample_block.1} parent=5 // pred_check_branch
        %404 = sbr.rel (%p402) target = $region101
      $region100: #{upsample_block.1} parent=5 // pred_region
        %s405 = ssub.s32 %s11, 2
        // Predicated region
        $region102: #{upsample_block.1} parent=100 // pred_check
          %p406 = pneg %p129
        $region103: #{upsample_block.1} parent=100 // pred_check_branch
          %408 = sbr.rel (%p406) target = $region105
        $region104: #{upsample_block.1} parent=100 // pred_region
          %s409 = sand.u32 %s114, 1
          %s410 = sand.u32 %s114, 1
          %s411 = smul.addr %s410, 32
          %s412 = scalar_lea.vmem [#allocation4], %s411
        $region105: #{upsample_block.1} parent=100 // pred_fallthru
          _
      $region101: #{upsample_block.1} parent=5 // pred_fallthru
        _
    $region6: #{upsample_block.1} parent=1 // loop_footer
      %s15 = sadd.s32 1, %s11
    $region7: #{upsample_block.1} parent=1 // loop_footer_branch
      %10 = sbr.rel target = $region3
    $region8: #{upsample_block.1} parent=1 // loop_exit
      _

</llo_original>
